<compile_context>
chip_gen: v5e
topology: v5e:2x2
jax: 0.10.0
libtpu: 0.0.40
codegen_flags: <defaults>
</compile_context>

<pallas_src>
import functools

import jax
import jax.numpy as jnp
from jax.experimental import pallas as pl
from jax.experimental.pallas import tpu as pltpu

LANE = 128      # vreg lane width  -> feature padding quantum (lane-dense loads/stores)
SUBLANE = 8     # sublane count    -> batch padding quantum


def _round_up(x, m):
    return ((x + m - 1) // m) * m


def _mlp_fused_kernel(*refs, n_layers):
    """Fused MLP forward.

    refs = (x_ref, w0_ref, b0_ref, w1_ref, b1_ref, ..., o_ref)
      x_ref : (tb, in_pad)          bf16
      wL_ref: (fin_pad_L, fout_pad_L) bf16 (zero-padded)
      bL_ref: (1, fout_pad_L)       f32  (zero-padded)
      o_ref : (tb, out_pad)         f32
    The intermediate activation is a traced value (bf16) -- no scratch round-trip.
    """
    x_ref, o_ref = refs[0], refs[-1]
    wb = refs[1:-1]

    h = x_ref[...]                                            # bf16, straight to the MXU
    y = None
    for layer in range(n_layers):                             # small static count -> unrolled
        w_ref = wb[2 * layer]
        b_ref = wb[2 * layer + 1]
        y = jnp.dot(h, w_ref[...], preferred_element_type=jnp.float32)   # MXU, f32 accumulate
        y = y + b_ref[...]                                    # VPU, f32 (bias broadcast)
        if layer < n_layers - 1:
            h = jnp.maximum(y, 0.0).astype(jnp.bfloat16)      # ReLU on all but last layer
    o_ref[...] = y.astype(o_ref.dtype)


def pack_params(params):
    """Per-layer (w:[in,out], b:[out]) -> individually zero-padded, lane-dense slabs.

    Zero padding is exact: padded weight rows/cols and bias entries are 0 and ReLU(0)=0, so
    padded feature lanes stay identically zero through every layer.
    """
    ws, bs = [], []
    for (w, b) in params:
        fin, fout = w.shape
        fin_p, fout_p = _round_up(fin, LANE), _round_up(fout, LANE)
        wp = jnp.zeros((fin_p, fout_p), jnp.bfloat16).at[:fin, :fout].set(w.astype(jnp.bfloat16))
        bp = jnp.zeros((1, fout_p), jnp.float32).at[0, :fout].set(b.astype(jnp.float32))
        ws.append(wp)
        bs.append(bp)
    return tuple(ws), tuple(bs)


def _pick_batch_tile(batch, per_row_bytes, resident_bytes, vmem_budget=48 << 20):
    """Batch tile sized by the *remaining* VMEM after the resident weights (not a fixed cap)."""
    bpad = _round_up(batch, SUBLANE)
    if bpad <= 512:
        return bpad, bpad                       # single full-array tile
    avail = max(vmem_budget - resident_bytes, 1 << 20)
    tb = 512
    while tb > 128 and 2 * tb * per_row_bytes > avail:   # x2: double-buffered activation tiles
        tb //= 2
    bpad = _round_up(bpad, tb)
    return bpad, tb


@functools.partial(jax.jit, static_argnames=("out_size", "single_buffer_weights"))
def _forward_impl(x, ws, bs, *, out_size, single_buffer_weights):
    batch, fin = x.shape
    n_layers = len(ws)
    in_pad = ws[0].shape[0]
    out_pad = ws[-1].shape[1]
    pads = [w.shape[0] for w in ws] + [out_pad]

    w_bytes = sum(int(w.size) * 2 for w in ws)          # bf16
    b_bytes = sum(int(b.size) * 4 for b in bs)          # f32
    n_buf = 1 if single_buffer_weights else 2
    resident_bytes = n_buf * (w_bytes + b_bytes)
    # rough per-batch-row working-set bytes: bf16 input + f32 output + f32 intermediates
    per_row_bytes = 2 * in_pad + 4 * out_pad + 6 * max(pads)

    bpad, tb = _pick_batch_tile(batch, per_row_bytes, resident_bytes)
    n_tiles = bpad // tb

    # bf16, lane-dense, zero-padded input slab
    x_pad = jnp.zeros((bpad, in_pad), jnp.bfloat16).at[:batch, :fin].set(x.astype(jnp.bfloat16))

    # Specs: batch-tiled activations; weights/biases constant index_map (fetched once, resident).
    x_spec = pl.BlockSpec((tb, in_pad), lambda i: (i, 0))
    o_spec = pl.BlockSpec((tb, out_pad), lambda i: (i, 0))
    wb_specs = []
    flat_wb = []
    for w, b in zip(ws, bs):
        if single_buffer_weights:
            wb_specs.append(pl.BlockSpec(w.shape, lambda i: (0, 0), pipeline_mode=pl.Buffered(1)))
            wb_specs.append(pl.BlockSpec(b.shape, lambda i: (0, 0), pipeline_mode=pl.Buffered(1)))
        else:
            wb_specs.append(pl.BlockSpec(w.shape, lambda i: (0, 0)))
            wb_specs.append(pl.BlockSpec(b.shape, lambda i: (0, 0)))
        flat_wb += [w, b]

    flops = 2 * bpad * sum(int(w.shape[0]) * int(w.shape[1]) for w in ws)
    bytes_accessed = int(x_pad.size) * 2 + w_bytes + b_bytes + bpad * out_pad * 4
    vmem_need = resident_bytes + 2 * tb * per_row_bytes + (2 << 20)
    vmem_limit = int(min(max(vmem_need, 32 << 20), 96 << 20))

    # Only shard across TensorCores when each core gets >=2 batch tiles (otherwise the duplicated
    # per-core weight DMA outweighs the megacore win for weight-bandwidth-bound shapes).
    dim_sem = ("parallel",) if n_tiles >= 4 else ("arbitrary",)

    kernel = functools.partial(_mlp_fused_kernel, n_layers=n_layers)
    out_slab = pl.pallas_call(
        kernel,
        out_shape=jax.ShapeDtypeStruct((bpad, out_pad), jnp.float32),
        grid_spec=pltpu.PrefetchScalarGridSpec(
            num_scalar_prefetch=0,
            grid=(n_tiles,),
            in_specs=[x_spec] + wb_specs,
            out_specs=o_spec,
        ),
        compiler_params=pltpu.CompilerParams(
            dimension_semantics=dim_sem,
            vmem_limit_bytes=vmem_limit,
        ),
        cost_estimate=pl.CostEstimate(
            flops=flops, transcendentals=0, bytes_accessed=bytes_accessed),
    )(x_pad, *flat_wb)

    return out_slab[:batch, :out_size]


def vanilla_nn_forward(x, ws, bs, *, out_size):
    """x: [B, Fin] -> [B, out_size]; whole MLP in one fused Pallas kernel."""
    try:
        return _forward_impl(x, ws, bs, out_size=out_size, single_buffer_weights=True)
    except Exception:
        # Fallback if this JAX build rejects pipeline_mode=pl.Buffered(1) on a top-level BlockSpec.
        return _forward_impl(x, ws, bs, out_size=out_size, single_buffer_weights=False)


def init_params(key, input_size, output_size, hidden_size, num_layers):
    """nn.Linear-style init; weights stored [in, out] so the kernel computes x @ W + b."""
    sizes = [input_size] + [hidden_size] * num_layers + [output_size]
    params = []
    for fin, fout in zip(sizes[:-1], sizes[1:]):
        key, kw, kb = jax.random.split(key, 3)
        bound = 1.0 / float(fin) ** 0.5
        w = jax.random.uniform(kw, (fin, fout), jnp.float32, -bound, bound)
        b = jax.random.uniform(kb, (fout,), jnp.float32, -bound, bound)
        params.append((w, b))
    return params


if __name__ == "__main__":
    # Shapes consistent with the module: batch=8, input=16, hidden=32, output=4, num_layers=2
    # -> linear layers: (16->32) ReLU, (32->32) ReLU, (32->4)
    input_size, output_size, hidden_size, num_layers = 16, 4, 32, 2
    batch = 8

    key = jax.random.PRNGKey(0)
    key, kx = jax.random.split(key)
    x = jax.random.normal(kx, (batch, input_size), jnp.float32)
    params = init_params(key, input_size, output_size, hidden_size, num_layers)

    ws, bs = pack_params(params)
    out = vanilla_nn_forward(x, ws, bs, out_size=output_size)
    out = jax.block_until_ready(out)
    assert out.shape == (batch, output_size)

    # Reference 1: identical bf16-matmul / f32-accumulate / bf16-carry math in plain JAX (tight).
    ref_bf16 = x.astype(jnp.bfloat16)
    for i, (w, b) in enumerate(params):
        ref_bf16 = jnp.dot(ref_bf16, w.astype(jnp.bfloat16),
                           preferred_element_type=jnp.float32) + b
        if i < len(params) - 1:
            ref_bf16 = jnp.maximum(ref_bf16, 0.0).astype(jnp.bfloat16)
    assert jnp.allclose(out, ref_bf16.astype(jnp.float32), atol=2e-2, rtol=2e-2)

    # Reference 2: full f32 math (loose; kernel uses bf16 MXU inputs per perf guidance).
    ref_f32 = x
    for i, (w, b) in enumerate(params):
        ref_f32 = ref_f32 @ w + b
        if i < len(params) - 1:
            ref_f32 = jnp.maximum(ref_f32, 0.0)
    assert jnp.allclose(out, ref_f32, atol=5e-2, rtol=5e-2)

    print("KERNEL_OK")
</pallas_src>

<mosaic_0001>
module attributes {stable_mosaic.version = 11 : i64} {
  func.func @_mlp_fused_kernel(%arg0: i32, %arg1: memref<8x128xbf16, #tpu.memory_space<vmem>>, %arg2: memref<128x128xbf16, #tpu.memory_space<vmem>>, %arg3: memref<1x128xf32, #tpu.memory_space<vmem>>, %arg4: memref<128x128xbf16, #tpu.memory_space<vmem>>, %arg5: memref<1x128xf32, #tpu.memory_space<vmem>>, %arg6: memref<128x128xbf16, #tpu.memory_space<vmem>>, %arg7: memref<1x128xf32, #tpu.memory_space<vmem>>, %arg8: memref<8x128xf32, #tpu.memory_space<vmem>>) attributes {dimension_semantics = [#tpu.dimension_semantics<arbitrary>], iteration_bounds = array<i64: 1>, scalar_prefetch = 0 : i64, scratch_operands = 0 : i64, tpu.core_type = #tpu.core_type<tc>, window_params = [{transform_indices = @transform_0, window_bounds = array<i64: 8, 128>}, {pipeline_mode = #tpu.pipeline_mode<synchronous>, transform_indices = @transform_1, window_bounds = array<i64: 128, 128>}, {pipeline_mode = #tpu.pipeline_mode<synchronous>, transform_indices = @transform_2, window_bounds = array<i64: 1, 128>}, {pipeline_mode = #tpu.pipeline_mode<synchronous>, transform_indices = @transform_3, window_bounds = array<i64: 128, 128>}, {pipeline_mode = #tpu.pipeline_mode<synchronous>, transform_indices = @transform_4, window_bounds = array<i64: 1, 128>}, {pipeline_mode = #tpu.pipeline_mode<synchronous>, transform_indices = @transform_5, window_bounds = array<i64: 128, 128>}, {pipeline_mode = #tpu.pipeline_mode<synchronous>, transform_indices = @transform_6, window_bounds = array<i64: 1, 128>}, {transform_indices = @transform_7, window_bounds = array<i64: 8, 128>}]} {
    %c0 = arith.constant 0 : index
    %c0_0 = arith.constant 0 : index
    %0 = vector.load %arg1[%c0, %c0_0] : memref<8x128xbf16, #tpu.memory_space<vmem>>, vector<8x128xbf16>
    %c0_1 = arith.constant 0 : index
    %c0_2 = arith.constant 0 : index
    %1 = vector.load %arg2[%c0_1, %c0_2] : memref<128x128xbf16, #tpu.memory_space<vmem>>, vector<128x128xbf16>
    %cst = arith.constant dense<0.000000e+00> : vector<8x128xf32>
    %2 = tpu.matmul %0, %1, %cst {dimension_numbers = #tpu.dot_dimension_numbers<[1], [0], [0], [1], [0, 0, 1, 1], [], []>} : vector<8x128xbf16>, vector<128x128xbf16>, vector<8x128xf32> -> vector<8x128xf32>
    %c0_3 = arith.constant 0 : index
    %c0_4 = arith.constant 0 : index
    %3 = vector.load %arg3[%c0_3, %c0_4] : memref<1x128xf32, #tpu.memory_space<vmem>>, vector<1x128xf32>
    %4 = vector.broadcast %3 : vector<1x128xf32> to vector<8x128xf32>
    %5 = arith.addf %2, %4 : vector<8x128xf32>
    %cst_5 = arith.constant 0.000000e+00 : f32
    %6 = vector.broadcast %cst_5 : f32 to vector<8x128xf32>
    %7 = arith.maximumf %5, %6 : vector<8x128xf32>
    %8 = arith.truncf %7 : vector<8x128xf32> to vector<8x128xbf16>
    %c0_6 = arith.constant 0 : index
    %c0_7 = arith.constant 0 : index
    %9 = vector.load %arg4[%c0_6, %c0_7] : memref<128x128xbf16, #tpu.memory_space<vmem>>, vector<128x128xbf16>
    %cst_8 = arith.constant dense<0.000000e+00> : vector<8x128xf32>
    %10 = tpu.matmul %8, %9, %cst_8 {dimension_numbers = #tpu.dot_dimension_numbers<[1], [0], [0], [1], [0, 0, 1, 1], [], []>} : vector<8x128xbf16>, vector<128x128xbf16>, vector<8x128xf32> -> vector<8x128xf32>
    %c0_9 = arith.constant 0 : index
    %c0_10 = arith.constant 0 : index
    %11 = vector.load %arg5[%c0_9, %c0_10] : memref<1x128xf32, #tpu.memory_space<vmem>>, vector<1x128xf32>
    %12 = vector.broadcast %11 : vector<1x128xf32> to vector<8x128xf32>
    %13 = arith.addf %10, %12 : vector<8x128xf32>
    %cst_11 = arith.constant 0.000000e+00 : f32
    %14 = vector.broadcast %cst_11 : f32 to vector<8x128xf32>
    %15 = arith.maximumf %13, %14 : vector<8x128xf32>
    %16 = arith.truncf %15 : vector<8x128xf32> to vector<8x128xbf16>
    %c0_12 = arith.constant 0 : index
    %c0_13 = arith.constant 0 : index
    %17 = vector.load %arg6[%c0_12, %c0_13] : memref<128x128xbf16, #tpu.memory_space<vmem>>, vector<128x128xbf16>
    %cst_14 = arith.constant dense<0.000000e+00> : vector<8x128xf32>
    %18 = tpu.matmul %16, %17, %cst_14 {dimension_numbers = #tpu.dot_dimension_numbers<[1], [0], [0], [1], [0, 0, 1, 1], [], []>} : vector<8x128xbf16>, vector<128x128xbf16>, vector<8x128xf32> -> vector<8x128xf32>
    %c0_15 = arith.constant 0 : index
    %c0_16 = arith.constant 0 : index
    %19 = vector.load %arg7[%c0_15, %c0_16] : memref<1x128xf32, #tpu.memory_space<vmem>>, vector<1x128xf32>
    %20 = vector.broadcast %19 : vector<1x128xf32> to vector<8x128xf32>
    %21 = arith.addf %18, %20 : vector<8x128xf32>
    %c0_17 = arith.constant 0 : index
    %c0_18 = arith.constant 0 : index
    %22 = vector.load %arg8[%c0_17, %c0_18] : memref<8x128xf32, #tpu.memory_space<vmem>>, vector<8x128xf32>
    tpu.vector_store %arg8[%c0_17, %c0_18], %21 {strides = array<i32>} : memref<8x128xf32, #tpu.memory_space<vmem>>, vector<8x128xf32>,
    return
  }
  func.func @transform_0(%arg0: i32) -> (i32, i32) {
    %c0_i32 = arith.constant 0 : i32
    %c0_i32_0 = arith.constant 0 : i32
    return %arg0, %c0_i32 : i32, i32
  }
  func.func @transform_1(%arg0: i32) -> (i32, i32) {
    %c0_i32 = arith.constant 0 : i32
    %c0_i32_0 = arith.constant 0 : i32
    %c0_i32_1 = arith.constant 0 : i32
    return %c0_i32, %c0_i32_0 : i32, i32
  }
  func.func @transform_2(%arg0: i32) -> (i32, i32) {
    %c0_i32 = arith.constant 0 : i32
    %c0_i32_0 = arith.constant 0 : i32
    %c0_i32_1 = arith.constant 0 : i32
    return %c0_i32, %c0_i32_0 : i32, i32
  }
  func.func @transform_3(%arg0: i32) -> (i32, i32) {
    %c0_i32 = arith.constant 0 : i32
    %c0_i32_0 = arith.constant 0 : i32
    %c0_i32_1 = arith.constant 0 : i32
    return %c0_i32, %c0_i32_0 : i32, i32
  }
  func.func @transform_4(%arg0: i32) -> (i32, i32) {
    %c0_i32 = arith.constant 0 : i32
    %c0_i32_0 = arith.constant 0 : i32
    %c0_i32_1 = arith.constant 0 : i32
    return %c0_i32, %c0_i32_0 : i32, i32
  }
  func.func @transform_5(%arg0: i32) -> (i32, i32) {
    %c0_i32 = arith.constant 0 : i32
    %c0_i32_0 = arith.constant 0 : i32
    %c0_i32_1 = arith.constant 0 : i32
    return %c0_i32, %c0_i32_0 : i32, i32
  }
  func.func @transform_6(%arg0: i32) -> (i32, i32) {
    %c0_i32 = arith.constant 0 : i32
    %c0_i32_0 = arith.constant 0 : i32
    %c0_i32_1 = arith.constant 0 : i32
    return %c0_i32, %c0_i32_0 : i32, i32
  }
  func.func @transform_7(%arg0: i32) -> (i32, i32) {
    %c0_i32 = arith.constant 0 : i32
    %c0_i32_0 = arith.constant 0 : i32
    return %arg0, %c0_i32 : i32, i32
  }
}

module attributes {stable_mosaic.version = 11 : i64} {
  func.func @_mlp_fused_kernel(%arg0: i32, %arg1: memref<8x128xbf16, #tpu.memory_space<vmem>>, %arg2: memref<128x128xbf16, #tpu.memory_space<vmem>>, %arg3: memref<1x128xf32, #tpu.memory_space<vmem>>, %arg4: memref<128x128xbf16, #tpu.memory_space<vmem>>, %arg5: memref<1x128xf32, #tpu.memory_space<vmem>>, %arg6: memref<128x128xbf16, #tpu.memory_space<vmem>>, %arg7: memref<1x128xf32, #tpu.memory_space<vmem>>, %arg8: memref<8x128xf32, #tpu.memory_space<vmem>>) attributes {dimension_semantics = [#tpu.dimension_semantics<arbitrary>], iteration_bounds = array<i64: 1>, scalar_prefetch = 0 : i64, scratch_operands = 0 : i64, tpu.core_type = #tpu.core_type<tc>, window_params = [{transform_indices = @transform_0, window_bounds = array<i64: 8, 128>}, {pipeline_mode = #tpu.pipeline_mode<synchronous>, transform_indices = @transform_1, window_bounds = array<i64: 128, 128>}, {pipeline_mode = #tpu.pipeline_mode<synchronous>, transform_indices = @transform_2, window_bounds = array<i64: 1, 128>}, {pipeline_mode = #tpu.pipeline_mode<synchronous>, transform_indices = @transform_3, window_bounds = array<i64: 128, 128>}, {pipeline_mode = #tpu.pipeline_mode<synchronous>, transform_indices = @transform_4, window_bounds = array<i64: 1, 128>}, {pipeline_mode = #tpu.pipeline_mode<synchronous>, transform_indices = @transform_5, window_bounds = array<i64: 128, 128>}, {pipeline_mode = #tpu.pipeline_mode<synchronous>, transform_indices = @transform_6, window_bounds = array<i64: 1, 128>}, {transform_indices = @transform_7, window_bounds = array<i64: 8, 128>}]} {
    %c0 = arith.constant 0 : index
    %c0_0 = arith.constant 0 : index
    %0 = vector.load %arg1[%c0, %c0_0] : memref<8x128xbf16, #tpu.memory_space<vmem>>, vector<8x128xbf16>
    %c0_1 = arith.constant 0 : index
    %c0_2 = arith.constant 0 : index
    %1 = vector.load %arg2[%c0_1, %c0_2] : memref<128x128xbf16, #tpu.memory_space<vmem>>, vector<128x128xbf16>
    %cst = arith.constant dense<0.000000e+00> : vector<8x128xf32>
    %2 = tpu.matmul %0, %1, %cst {dimension_numbers = #tpu.dot_dimension_numbers<[1], [0], [0], [1], [0, 0, 1, 1], [], []>} : vector<8x128xbf16>, vector<128x128xbf16>, vector<8x128xf32> -> vector<8x128xf32>
    %c0_3 = arith.constant 0 : index
    %c0_4 = arith.constant 0 : index
    %3 = vector.load %arg3[%c0_3, %c0_4] : memref<1x128xf32, #tpu.memory_space<vmem>>, vector<1x128xf32>
    %4 = vector.broadcast %3 : vector<1x128xf32> to vector<8x128xf32>
    %5 = arith.addf %2, %4 : vector<8x128xf32>
    %cst_5 = arith.constant 0.000000e+00 : f32
    %6 = vector.broadcast %cst_5 : f32 to vector<8x128xf32>
    %7 = arith.maximumf %5, %6 : vector<8x128xf32>
    %8 = arith.truncf %7 : vector<8x128xf32> to vector<8x128xbf16>
    %c0_6 = arith.constant 0 : index
    %c0_7 = arith.constant 0 : index
    %9 = vector.load %arg4[%c0_6, %c0_7] : memref<128x128xbf16, #tpu.memory_space<vmem>>, vector<128x128xbf16>
    %cst_8 = arith.constant dense<0.000000e+00> : vector<8x128xf32>
    %10 = tpu.matmul %8, %9, %cst_8 {dimension_numbers = #tpu.dot_dimension_numbers<[1], [0], [0], [1], [0, 0, 1, 1], [], []>} : vector<8x128xbf16>, vector<128x128xbf16>, vector<8x128xf32> -> vector<8x128xf32>
    %c0_9 = arith.constant 0 : index
    %c0_10 = arith.constant 0 : index
    %11 = vector.load %arg5[%c0_9, %c0_10] : memref<1x128xf32, #tpu.memory_space<vmem>>, vector<1x128xf32>
    %12 = vector.broadcast %11 : vector<1x128xf32> to vector<8x128xf32>
    %13 = arith.addf %10, %12 : vector<8x128xf32>
    %cst_11 = arith.constant 0.000000e+00 : f32
    %14 = vector.broadcast %cst_11 : f32 to vector<8x128xf32>
    %15 = arith.maximumf %13, %14 : vector<8x128xf32>
    %16 = arith.truncf %15 : vector<8x128xf32> to vector<8x128xbf16>
    %c0_12 = arith.constant 0 : index
    %c0_13 = arith.constant 0 : index
    %17 = vector.load %arg6[%c0_12, %c0_13] : memref<128x128xbf16, #tpu.memory_space<vmem>>, vector<128x128xbf16>
    %cst_14 = arith.constant dense<0.000000e+00> : vector<8x128xf32>
    %18 = tpu.matmul %16, %17, %cst_14 {dimension_numbers = #tpu.dot_dimension_numbers<[1], [0], [0], [1], [0, 0, 1, 1], [], []>} : vector<8x128xbf16>, vector<128x128xbf16>, vector<8x128xf32> -> vector<8x128xf32>
    %c0_15 = arith.constant 0 : index
    %c0_16 = arith.constant 0 : index
    %19 = vector.load %arg7[%c0_15, %c0_16] : memref<1x128xf32, #tpu.memory_space<vmem>>, vector<1x128xf32>
    %20 = vector.broadcast %19 : vector<1x128xf32> to vector<8x128xf32>
    %21 = arith.addf %18, %20 : vector<8x128xf32>
    %c0_17 = arith.constant 0 : index
    %c0_18 = arith.constant 0 : index
    %22 = vector.load %arg8[%c0_17, %c0_18] : memref<8x128xf32, #tpu.memory_space<vmem>>, vector<8x128xf32>
    tpu.vector_store %arg8[%c0_17, %c0_18], %21 {strides = array<i32>} : memref<8x128xf32, #tpu.memory_space<vmem>>, vector<8x128xf32>,
    return
  }
  func.func @transform_0(%arg0: i32) -> (i32, i32) {
    %c0_i32 = arith.constant 0 : i32
    %c0_i32_0 = arith.constant 0 : i32
    return %arg0, %c0_i32 : i32, i32
  }
  func.func @transform_1(%arg0: i32) -> (i32, i32) {
    %c0_i32 = arith.constant 0 : i32
    %c0_i32_0 = arith.constant 0 : i32
    %c0_i32_1 = arith.constant 0 : i32
    return %c0_i32, %c0_i32_0 : i32, i32
  }
  func.func @transform_2(%arg0: i32) -> (i32, i32) {
    %c0_i32 = arith.constant 0 : i32
    %c0_i32_0 = arith.constant 0 : i32
    %c0_i32_1 = arith.constant 0 : i32
    return %c0_i32, %c0_i32_0 : i32, i32
  }
  func.func @transform_3(%arg0: i32) -> (i32, i32) {
    %c0_i32 = arith.constant 0 : i32
    %c0_i32_0 = arith.constant 0 : i32
    %c0_i32_1 = arith.constant 0 : i32
    return %c0_i32, %c0_i32_0 : i32, i32
  }
  func.func @transform_4(%arg0: i32) -> (i32, i32) {
    %c0_i32 = arith.constant 0 : i32
    %c0_i32_0 = arith.constant 0 : i32
    %c0_i32_1 = arith.constant 0 : i32
    return %c0_i32, %c0_i32_0 : i32, i32
  }
  func.func @transform_5(%arg0: i32) -> (i32, i32) {
    %c0_i32 = arith.constant 0 : i32
    %c0_i32_0 = arith.constant 0 : i32
    %c0_i32_1 = arith.constant 0 : i32
    return %c0_i32, %c0_i32_0 : i32, i32
  }
  func.func @transform_6(%arg0: i32) -> (i32, i32) {
    %c0_i32 = arith.constant 0 : i32
    %c0_i32_0 = arith.constant 0 : i32
    %c0_i32_1 = arith.constant 0 : i32
    return %c0_i32, %c0_i32_0 : i32, i32
  }
  func.func @transform_7(%arg0: i32) -> (i32, i32) {
    %c0_i32 = arith.constant 0 : i32
    %c0_i32_0 = arith.constant 0 : i32
    return %arg0, %c0_i32 : i32, i32
  }
}

</mosaic_0001>

<llo_original>
// kernel: _forward_impl.1
$region0: #{_forward_impl.1}
  #allocation0 [shape = 'u32[]', space=smem, size = 0x4, offset = 0x4, fixed_abs, tag = 'smem constant byte address 0x4 - core index']
  #allocation1 [shape = 'u32[72,128]{1,0:T(1,128)}', space=vmem, size = 0x9000, scoped, tag = 'internal scratch']
  %s0 = inlined_call_operand.vmem [shape: bf16[8,128], index: 0, kind: input, shape index: {}]
  %s1 = inlined_call_operand.hbm [shape: bf16[128,128], index: 1, kind: input, shape index: {}]
  %s2 = inlined_call_operand.vmem [shape: f32[1,128], index: 2, kind: input, shape index: {}]
  %s3 = inlined_call_operand.hbm [shape: bf16[128,128], index: 3, kind: input, shape index: {}]
  %s4 = inlined_call_operand.vmem [shape: f32[1,128], index: 4, kind: input, shape index: {}]
  %s5 = inlined_call_operand.hbm [shape: bf16[128,128], index: 5, kind: input, shape index: {}]
  %s6 = inlined_call_operand.vmem [shape: f32[1,128], index: 6, kind: input, shape index: {}]
  %s7 = inlined_call_operand.vmem [shape: f32[8,128], index: 7, kind: output, shape index: {}]
  %s8 = sld [smem:[#allocation0]]
  $region50: #{_forward_impl.1} parent=0
    _
  %s10 = ssub.s32 1, %s8
  %s11 = scalar_select 0, %s10, %s8
  $region1: #{_forward_impl.1} parent=0
    #allocation2 [shape = 'u8[32768]{0}', space=vmem, size = 0x8000, scoped, tag = 'input window, operand 1, single buffered']
    #allocation3 [shape = 's32[1]{0}', space=sflag, size = 0x4, scoped, tag = 'scoped memory for _forward_impl.1']
    #allocation4 [shape = 'u8[32768]{0}', space=vmem, size = 0x8000, scoped, tag = 'input window, operand 3, single buffered']
    #allocation5 [shape = 's32[1]{0}', space=sflag, size = 0x4, scoped, tag = 'scoped memory for _forward_impl.1']
    #allocation6 [shape = 'u8[32768]{0}', space=vmem, size = 0x8000, scoped, tag = 'input window, operand 5, single buffered']
    %12 = vsyncpa [#allocation3], 0
    %13 = vsyncpa [#allocation5], 0
    // Predicated region
    $region2: #{_forward_impl.1} parent=1 // pred_check
      _
    $region3: #{_forward_impl.1} parent=1 // pred_check_branch
      %15 = sbr.rel (0) target = $region5
    $region4: #{_forward_impl.1} parent=1 // pred_region
      _
    $region5: #{_forward_impl.1} parent=1 // pred_fallthru
      _
    // Predicated region
    $region6: #{_forward_impl.1} parent=1 // pred_check
      _
    $region7: #{_forward_impl.1} parent=1 // pred_check_branch
      %17 = sbr.rel (0) target = $region9
    $region8: #{_forward_impl.1} parent=1 // pred_region
      %19 = vsyncadd [#allocation3], 0
      %s20 = sshll.u32 %s1, 4
      %s21 = int_to_ptr.hbm [resolvable:$true] %s20
      %s22 = sshll.u32 [#allocation2], 4
      %s23 = int_to_ptr.vmem [resolvable:$true] %s22
      %28 = dma.hbm_to_vmem [thread:$0]  %s21, 1024, %s23, [#allocation3], 64, 64, 4
    $region9: #{_forward_impl.1} parent=1 // pred_fallthru
      _
    // Predicated region
    $region10: #{_forward_impl.1} parent=1 // pred_check
      _
    $region11: #{_forward_impl.1} parent=1 // pred_check_branch
      %30 = sbr.rel (0) target = $region13
    $region12: #{_forward_impl.1} parent=1 // pred_region
      _
    $region13: #{_forward_impl.1} parent=1 // pred_fallthru
      _
    // Predicated region
    $region14: #{_forward_impl.1} parent=1 // pred_check
      _
    $region15: #{_forward_impl.1} parent=1 // pred_check_branch
      %32 = sbr.rel (0) target = $region17
    $region16: #{_forward_impl.1} parent=1 // pred_region
      %34 = vsyncadd [#allocation5], 0
      %s35 = sshll.u32 %s3, 4
      %s36 = int_to_ptr.hbm [resolvable:$true] %s35
      %s37 = sshll.u32 [#allocation4], 4
      %s38 = int_to_ptr.vmem [resolvable:$true] %s37
      %43 = dma.hbm_to_vmem [thread:$0]  %s36, 1024, %s38, [#allocation5], 64, 64, 4
    $region17: #{_forward_impl.1} parent=1 // pred_fallthru
      _
    // Predicated region
    $region18: #{_forward_impl.1} parent=1 // pred_check
      _
    $region19: #{_forward_impl.1} parent=1 // pred_check_branch
      %45 = sbr.rel (0) target = $region21
    $region20: #{_forward_impl.1} parent=1 // pred_region
      _
    $region21: #{_forward_impl.1} parent=1 // pred_fallthru
      _
    // Predicated region
    $region22: #{_forward_impl.1} parent=1 // pred_check
      _
    $region23: #{_forward_impl.1} parent=1 // pred_check_branch
      %47 = sbr.rel (0) target = $region25
    $region24: #{_forward_impl.1} parent=1 // pred_region
      %49 = vsyncadd [#allocation5], 0
      %s50 = sshll.u32 %s5, 4
      %s51 = int_to_ptr.hbm [resolvable:$true] %s50
      %s52 = sshll.u32 [#allocation6], 4
      %s53 = int_to_ptr.vmem [resolvable:$true] %s52
      %58 = dma.hbm_to_vmem [thread:$0]  %s51, 1024, %s53, [#allocation5], 64, 64, 4
    $region25: #{_forward_impl.1} parent=1 // pred_fallthru
      _
    // Predicated region
    $region26: #{_forward_impl.1} parent=1 // pred_check
      _
    $region27: #{_forward_impl.1} parent=1 // pred_check_branch
      %60 = sbr.rel (0) target = $region29
    $region28: #{_forward_impl.1} parent=1 // pred_region
      _
    $region29: #{_forward_impl.1} parent=1 // pred_fallthru
      _
    // Predicated region
    $region30: #{_forward_impl.1} parent=1 // pred_check
      _
    $region31: #{_forward_impl.1} parent=1 // pred_check_branch
      %62 = sbr.rel (0) target = $region33
    $region32: #{_forward_impl.1} parent=1 // pred_region
      %64 = dma.done [#allocation3], 1024
    $region33: #{_forward_impl.1} parent=1 // pred_fallthru
      _
    // Predicated region
    $region34: #{_forward_impl.1} parent=1 // pred_check
      _
    $region35: #{_forward_impl.1} parent=1 // pred_check_branch
      %66 = sbr.rel (0) target = $region37
    $region36: #{_forward_impl.1} parent=1 // pred_region
      %68 = dma.done [#allocation5], 1024
    $region37: #{_forward_impl.1} parent=1 // pred_fallthru
      _
    // Predicated region
    $region38: #{_forward_impl.1} parent=1 // pred_check
      _
    $region39: #{_forward_impl.1} parent=1 // pred_check_branch
      %70 = sbr.rel (0) target = $region41
    $region40: #{_forward_impl.1} parent=1 // pred_region
      %72 = dma.done [#allocation5], 1024
    $region41: #{_forward_impl.1} parent=1 // pred_fallthru
      _
    %v73 = vld [vmem:[%s0] sm:$0xf]
    %v74 = vld [vmem:[#allocation2] sm:$0xf]
    %v75 = vld [vmem:[#allocation2 + $0x4] sm:$0xf]
    %v76 = vld [vmem:[#allocation2 + $0x8] sm:$0xf]
    %v77 = vld [vmem:[#allocation2 + $0xc] sm:$0xf]
    %v78 = vld [vmem:[#allocation2 + $0x10] sm:$0xf]
    %v79 = vld [vmem:[#allocation2 + $0x14] sm:$0xf]
    %v80 = vld [vmem:[#allocation2 + $0x18] sm:$0xf]
    %v81 = vld [vmem:[#allocation2 + $0x1c] sm:$0xf]
    %v82 = vld [vmem:[#allocation2 + $0x20] sm:$0xf]
    %v83 = vld [vmem:[#allocation2 + $0x24] sm:$0xf]
    %v84 = vld [vmem:[#allocation2 + $0x28] sm:$0xf]
    %v85 = vld [vmem:[#allocation2 + $0x2c] sm:$0xf]
    %v86 = vld [vmem:[#allocation2 + $0x30] sm:$0xf]
    %v87 = vld [vmem:[#allocation2 + $0x34] sm:$0xf]
    %v88 = vld [vmem:[#allocation2 + $0x38] sm:$0xf]
    %v89 = vld [vmem:[#allocation2 + $0x3c] sm:$0xf]
    %v90 = vld [vmem:[%s2] sm:$0x1]
    %v92 = vperm.slane %v90, 0
    %v110 = vunpack.c.l.b16 %v74
    %v111 = vunpack.c.l.b16 %v75
    %v112 = vunpack.c.l.b16 %v76
    %v113 = vunpack.c.l.b16 %v77
    %v114 = vunpack.c.l.b16 %v78
    %v115 = vunpack.c.l.b16 %v79
    %v116 = vunpack.c.l.b16 %v80
    %v117 = vunpack.c.l.b16 %v81
    %v118 = vunpack.c.l.b16 %v82
    %v119 = vunpack.c.l.b16 %v83
    %v120 = vunpack.c.l.b16 %v84
    %v121 = vunpack.c.l.b16 %v85
    %v122 = vunpack.c.l.b16 %v86
    %v123 = vunpack.c.l.b16 %v87
    %v124 = vunpack.c.l.b16 %v88
    %v125 = vunpack.c.l.b16 %v89
    %v126 = vpack.c.b16 %v111, %v110
    %v127 = vpack.c.b16 %v113, %v112
    %v128 = vpack.c.b16 %v115, %v114
    %v129 = vpack.c.b16 %v117, %v116
    %v130 = vpack.c.b16 %v119, %v118
    %v131 = vpack.c.b16 %v121, %v120
    %v132 = vpack.c.b16 %v123, %v122
    %v133 = vpack.c.b16 %v125, %v124
    %142 = vmatpush.bf16.msra.mxu0 %v133
    %143 = vmatpush.bf16.msra.mxu0 %v132
    %144 = vmatpush.bf16.msra.mxu0 %v131
    %145 = vmatpush.bf16.msra.mxu0 %v130
    %146 = vmatpush.bf16.msra.mxu0 %v129
    %147 = vmatpush.bf16.msra.mxu0 %v128
    %148 = vmatpush.bf16.msra.mxu0 %v127
    %149 = vmatpush.bf16.msra.mxu0 %v126
    %150 = vmatmul.bf16.gmra.mxu0 %v73
    %v151 = vpop.f32.mrf.mxu0
    %v152 = vadd.f32 %v92, %v151
    %v153 = vpop.f32.mrf.mxu0
    %154 = vdwg.mxu0
    %v155 = vmax.f32 %v152, 0.0
    %v156 = vpack.c.bf16 %v155, %v155
    %v157 = vld [vmem:[#allocation4] sm:$0xf]
    %v158 = vld [vmem:[#allocation4 + $0x4] sm:$0xf]
    %v159 = vld [vmem:[#allocation4 + $0x8] sm:$0xf]
    %v160 = vld [vmem:[#allocation4 + $0xc] sm:$0xf]
    %v161 = vld [vmem:[#allocation4 + $0x10] sm:$0xf]
    %v162 = vld [vmem:[#allocation4 + $0x14] sm:$0xf]
    %v163 = vld [vmem:[#allocation4 + $0x18] sm:$0xf]
    %v164 = vld [vmem:[#allocation4 + $0x1c] sm:$0xf]
    %v165 = vld [vmem:[#allocation4 + $0x20] sm:$0xf]
    %v166 = vld [vmem:[#allocation4 + $0x24] sm:$0xf]
    %v167 = vld [vmem:[#allocation4 + $0x28] sm:$0xf]
    %v168 = vld [vmem:[#allocation4 + $0x2c] sm:$0xf]
    %v169 = vld [vmem:[#allocation4 + $0x30] sm:$0xf]
    %v170 = vld [vmem:[#allocation4 + $0x34] sm:$0xf]
    %v171 = vld [vmem:[#allocation4 + $0x38] sm:$0xf]
    %v172 = vld [vmem:[#allocation4 + $0x3c] sm:$0xf]
    %v173 = vld [vmem:[%s4] sm:$0x1]
    %v175 = vperm.slane %v173, 0
    %v193 = vunpack.c.l.b16 %v157
    %v194 = vunpack.c.l.b16 %v158
    %v195 = vunpack.c.l.b16 %v159
    %v196 = vunpack.c.l.b16 %v160
    %v197 = vunpack.c.l.b16 %v161
    %v198 = vunpack.c.l.b16 %v162
    %v199 = vunpack.c.l.b16 %v163
    %v200 = vunpack.c.l.b16 %v164
    %v201 = vunpack.c.l.b16 %v165
    %v202 = vunpack.c.l.b16 %v166
    %v203 = vunpack.c.l.b16 %v167
    %v204 = vunpack.c.l.b16 %v168
    %v205 = vunpack.c.l.b16 %v169
    %v206 = vunpack.c.l.b16 %v170
    %v207 = vunpack.c.l.b16 %v171
    %v208 = vunpack.c.l.b16 %v172
    %v209 = vpack.c.b16 %v194, %v193
    %v210 = vpack.c.b16 %v196, %v195
    %v211 = vpack.c.b16 %v198, %v197
    %v212 = vpack.c.b16 %v200, %v199
    %v213 = vpack.c.b16 %v202, %v201
    %v214 = vpack.c.b16 %v204, %v203
    %v215 = vpack.c.b16 %v206, %v205
    %v216 = vpack.c.b16 %v208, %v207
    %225 = vmatpush.bf16.msra.mxu0 %v216
    %226 = vmatpush.bf16.msra.mxu0 %v215
    %227 = vmatpush.bf16.msra.mxu0 %v214
    %228 = vmatpush.bf16.msra.mxu0 %v213
    %229 = vmatpush.bf16.msra.mxu0 %v212
    %230 = vmatpush.bf16.msra.mxu0 %v211
    %231 = vmatpush.bf16.msra.mxu0 %v210
    %232 = vmatpush.bf16.msra.mxu0 %v209
    %233 = vmatmul.bf16.gmra.mxu0 %v156
    %v234 = vpop.f32.mrf.mxu0
    %v235 = vadd.f32 %v175, %v234
    %v236 = vpop.f32.mrf.mxu0
    %237 = vdwg.mxu0
    %v238 = vmax.f32 %v235, 0.0
    %v239 = vpack.c.bf16 %v238, %v238
    %v240 = vld [vmem:[#allocation6] sm:$0xf]
    %v241 = vld [vmem:[#allocation6 + $0x4] sm:$0xf]
    %v242 = vld [vmem:[#allocation6 + $0x8] sm:$0xf]
    %v243 = vld [vmem:[#allocation6 + $0xc] sm:$0xf]
    %v244 = vld [vmem:[#allocation6 + $0x10] sm:$0xf]
    %v245 = vld [vmem:[#allocation6 + $0x14] sm:$0xf]
    %v246 = vld [vmem:[#allocation6 + $0x18] sm:$0xf]
    %v247 = vld [vmem:[#allocation6 + $0x1c] sm:$0xf]
    %v248 = vld [vmem:[#allocation6 + $0x20] sm:$0xf]
    %v249 = vld [vmem:[#allocation6 + $0x24] sm:$0xf]
    %v250 = vld [vmem:[#allocation6 + $0x28] sm:$0xf]
    %v251 = vld [vmem:[#allocation6 + $0x2c] sm:$0xf]
    %v252 = vld [vmem:[#allocation6 + $0x30] sm:$0xf]
    %v253 = vld [vmem:[#allocation6 + $0x34] sm:$0xf]
    %v254 = vld [vmem:[#allocation6 + $0x38] sm:$0xf]
    %v255 = vld [vmem:[#allocation6 + $0x3c] sm:$0xf]
    %v256 = vld [vmem:[%s6] sm:$0x1]
    %v258 = vperm.slane %v256, 0
    %v276 = vunpack.c.l.b16 %v240
    %v277 = vunpack.c.l.b16 %v241
    %v278 = vunpack.c.l.b16 %v242
    %v279 = vunpack.c.l.b16 %v243
    %v280 = vunpack.c.l.b16 %v244
    %v281 = vunpack.c.l.b16 %v245
    %v282 = vunpack.c.l.b16 %v246
    %v283 = vunpack.c.l.b16 %v247
    %v284 = vunpack.c.l.b16 %v248
    %v285 = vunpack.c.l.b16 %v249
    %v286 = vunpack.c.l.b16 %v250
    %v287 = vunpack.c.l.b16 %v251
    %v288 = vunpack.c.l.b16 %v252
    %v289 = vunpack.c.l.b16 %v253
    %v290 = vunpack.c.l.b16 %v254
    %v291 = vunpack.c.l.b16 %v255
    %v292 = vpack.c.b16 %v277, %v276
    %v293 = vpack.c.b16 %v279, %v278
    %v294 = vpack.c.b16 %v281, %v280
    %v295 = vpack.c.b16 %v283, %v282
    %v296 = vpack.c.b16 %v285, %v284
    %v297 = vpack.c.b16 %v287, %v286
    %v298 = vpack.c.b16 %v289, %v288
    %v299 = vpack.c.b16 %v291, %v290
    %308 = vmatpush.bf16.msra.mxu0 %v299
    %309 = vmatpush.bf16.msra.mxu0 %v298
    %310 = vmatpush.bf16.msra.mxu0 %v297
    %311 = vmatpush.bf16.msra.mxu0 %v296
    %312 = vmatpush.bf16.msra.mxu0 %v295
    %313 = vmatpush.bf16.msra.mxu0 %v294
    %314 = vmatpush.bf16.msra.mxu0 %v293
    %315 = vmatpush.bf16.msra.mxu0 %v292
    %316 = vmatmul.bf16.gmra.mxu0 %v239
    %v317 = vpop.f32.mrf.mxu0
    %v318 = vadd.f32 %v258, %v317
    %v319 = vpop.f32.mrf.mxu0
    %320 = vdwg.mxu0
    %321 = vst [vmem:[%s7] sm:$0xff] %v318
    // Predicated region
    $region42: #{_forward_impl.1} parent=1 // pred_check
      _
    $region43: #{_forward_impl.1} parent=1 // pred_check_branch
      %323 = sbr.rel (0) target = $region45
    $region44: #{_forward_impl.1} parent=1 // pred_region
      _
    $region45: #{_forward_impl.1} parent=1 // pred_fallthru
      _
    // Predicated region
    $region46: #{_forward_impl.1} parent=1 // pred_check
      _
    $region47: #{_forward_impl.1} parent=1 // pred_check_branch
      %325 = sbr.rel (0) target = $region49
    $region48: #{_forward_impl.1} parent=1 // pred_region
      _
    $region49: #{_forward_impl.1} parent=1 // pred_fallthru
      _
    %326 = vsyncpa [#allocation3], 1
    %327 = vsyncpa [#allocation5], 1

// kernel: _forward_impl.1
$region0: #{_forward_impl.1}
  #allocation0 [shape = 'u32[]', space=smem, size = 0x4, offset = 0x4, fixed_abs, tag = 'smem constant byte address 0x4 - core index']
  #allocation1 [shape = 'u32[72,128]{1,0:T(1,128)}', space=vmem, size = 0x9000, scoped, tag = 'internal scratch']
  %s0 = inlined_call_operand.vmem [shape: bf16[8,128], index: 0, kind: input, shape index: {}]
  %s1 = inlined_call_operand.hbm [shape: bf16[128,128], index: 1, kind: input, shape index: {}]
  %s2 = inlined_call_operand.vmem [shape: f32[1,128], index: 2, kind: input, shape index: {}]
  %s3 = inlined_call_operand.hbm [shape: bf16[128,128], index: 3, kind: input, shape index: {}]
  %s4 = inlined_call_operand.vmem [shape: f32[1,128], index: 4, kind: input, shape index: {}]
  %s5 = inlined_call_operand.hbm [shape: bf16[128,128], index: 5, kind: input, shape index: {}]
  %s6 = inlined_call_operand.vmem [shape: f32[1,128], index: 6, kind: input, shape index: {}]
  %s7 = inlined_call_operand.vmem [shape: f32[8,128], index: 7, kind: output, shape index: {}]
  %s8 = sld [smem:[#allocation0]]
  $region50: #{_forward_impl.1} parent=0
    _
  %s10 = ssub.s32 1, %s8
  %s11 = scalar_select 0, %s10, %s8
  $region1: #{_forward_impl.1} parent=0
    #allocation2 [shape = 'u8[32768]{0}', space=vmem, size = 0x8000, scoped, tag = 'input window, operand 1, single buffered']
    #allocation3 [shape = 's32[1]{0}', space=sflag, size = 0x4, scoped, tag = 'scoped memory for _forward_impl.1']
    #allocation4 [shape = 'u8[32768]{0}', space=vmem, size = 0x8000, scoped, tag = 'input window, operand 3, single buffered']
    #allocation5 [shape = 's32[1]{0}', space=sflag, size = 0x4, scoped, tag = 'scoped memory for _forward_impl.1']
    #allocation6 [shape = 'u8[32768]{0}', space=vmem, size = 0x8000, scoped, tag = 'input window, operand 5, single buffered']
    %12 = vsyncpa [#allocation3], 0
    %13 = vsyncpa [#allocation5], 0
    // Predicated region
    $region2: #{_forward_impl.1} parent=1 // pred_check
      _
    $region3: #{_forward_impl.1} parent=1 // pred_check_branch
      %15 = sbr.rel (0) target = $region5
    $region4: #{_forward_impl.1} parent=1 // pred_region
      _
    $region5: #{_forward_impl.1} parent=1 // pred_fallthru
      _
    // Predicated region
    $region6: #{_forward_impl.1} parent=1 // pred_check
      _
    $region7: #{_forward_impl.1} parent=1 // pred_check_branch
      %17 = sbr.rel (0) target = $region9
    $region8: #{_forward_impl.1} parent=1 // pred_region
      %19 = vsyncadd [#allocation3], 0
      %s20 = sshll.u32 %s1, 4
      %s21 = int_to_ptr.hbm [resolvable:$true] %s20
      %s22 = sshll.u32 [#allocation2], 4
      %s23 = int_to_ptr.vmem [resolvable:$true] %s22
      %28 = dma.hbm_to_vmem [thread:$0]  %s21, 1024, %s23, [#allocation3], 64, 64, 4
    $region9: #{_forward_impl.1} parent=1 // pred_fallthru
      _
    // Predicated region
    $region10: #{_forward_impl.1} parent=1 // pred_check
      _
    $region11: #{_forward_impl.1} parent=1 // pred_check_branch
      %30 = sbr.rel (0) target = $region13
    $region12: #{_forward_impl.1} parent=1 // pred_region
      _
    $region13: #{_forward_impl.1} parent=1 // pred_fallthru
      _
    // Predicated region
    $region14: #{_forward_impl.1} parent=1 // pred_check
      _
    $region15: #{_forward_impl.1} parent=1 // pred_check_branch
      %32 = sbr.rel (0) target = $region17
    $region16: #{_forward_impl.1} parent=1 // pred_region
      %34 = vsyncadd [#allocation5], 0
      %s35 = sshll.u32 %s3, 4
      %s36 = int_to_ptr.hbm [resolvable:$true] %s35
      %s37 = sshll.u32 [#allocation4], 4
      %s38 = int_to_ptr.vmem [resolvable:$true] %s37
      %43 = dma.hbm_to_vmem [thread:$0]  %s36, 1024, %s38, [#allocation5], 64, 64, 4
    $region17: #{_forward_impl.1} parent=1 // pred_fallthru
      _
    // Predicated region
    $region18: #{_forward_impl.1} parent=1 // pred_check
      _
    $region19: #{_forward_impl.1} parent=1 // pred_check_branch
      %45 = sbr.rel (0) target = $region21
    $region20: #{_forward_impl.1} parent=1 // pred_region
      _
    $region21: #{_forward_impl.1} parent=1 // pred_fallthru
      _
    // Predicated region
    $region22: #{_forward_impl.1} parent=1 // pred_check
      _
    $region23: #{_forward_impl.1} parent=1 // pred_check_branch
      %47 = sbr.rel (0) target = $region25
    $region24: #{_forward_impl.1} parent=1 // pred_region
      %49 = vsyncadd [#allocation5], 0
      %s50 = sshll.u32 %s5, 4
      %s51 = int_to_ptr.hbm [resolvable:$true] %s50
      %s52 = sshll.u32 [#allocation6], 4
      %s53 = int_to_ptr.vmem [resolvable:$true] %s52
      %58 = dma.hbm_to_vmem [thread:$0]  %s51, 1024, %s53, [#allocation5], 64, 64, 4
    $region25: #{_forward_impl.1} parent=1 // pred_fallthru
      _
    // Predicated region
    $region26: #{_forward_impl.1} parent=1 // pred_check
      _
    $region27: #{_forward_impl.1} parent=1 // pred_check_branch
      %60 = sbr.rel (0) target = $region29
    $region28: #{_forward_impl.1} parent=1 // pred_region
      _
    $region29: #{_forward_impl.1} parent=1 // pred_fallthru
      _
    // Predicated region
    $region30: #{_forward_impl.1} parent=1 // pred_check
      _
    $region31: #{_forward_impl.1} parent=1 // pred_check_branch
      %62 = sbr.rel (0) target = $region33
    $region32: #{_forward_impl.1} parent=1 // pred_region
      %64 = dma.done [#allocation3], 1024
    $region33: #{_forward_impl.1} parent=1 // pred_fallthru
      _
    // Predicated region
    $region34: #{_forward_impl.1} parent=1 // pred_check
      _
    $region35: #{_forward_impl.1} parent=1 // pred_check_branch
      %66 = sbr.rel (0) target = $region37
    $region36: #{_forward_impl.1} parent=1 // pred_region
      %68 = dma.done [#allocation5], 1024
    $region37: #{_forward_impl.1} parent=1 // pred_fallthru
      _
    // Predicated region
    $region38: #{_forward_impl.1} parent=1 // pred_check
      _
    $region39: #{_forward_impl.1} parent=1 // pred_check_branch
      %70 = sbr.rel (0) target = $region41
    $region40: #{_forward_impl.1} parent=1 // pred_region
      %72 = dma.done [#allocation5], 1024
    $region41: #{_forward_impl.1} parent=1 // pred_fallthru
      _
    %v73 = vld [vmem:[%s0] sm:$0xf]
    %v74 = vld [vmem:[#allocation2] sm:$0xf]
    %v75 = vld [vmem:[#allocation2 + $0x4] sm:$0xf]
    %v76 = vld [vmem:[#allocation2 + $0x8] sm:$0xf]
    %v77 = vld [vmem:[#allocation2 + $0xc] sm:$0xf]
    %v78 = vld [vmem:[#allocation2 + $0x10] sm:$0xf]
    %v79 = vld [vmem:[#allocation2 + $0x14] sm:$0xf]
    %v80 = vld [vmem:[#allocation2 + $0x18] sm:$0xf]
    %v81 = vld [vmem:[#allocation2 + $0x1c] sm:$0xf]
    %v82 = vld [vmem:[#allocation2 + $0x20] sm:$0xf]
    %v83 = vld [vmem:[#allocation2 + $0x24] sm:$0xf]
    %v84 = vld [vmem:[#allocation2 + $0x28] sm:$0xf]
    %v85 = vld [vmem:[#allocation2 + $0x2c] sm:$0xf]
    %v86 = vld [vmem:[#allocation2 + $0x30] sm:$0xf]
    %v87 = vld [vmem:[#allocation2 + $0x34] sm:$0xf]
    %v88 = vld [vmem:[#allocation2 + $0x38] sm:$0xf]
    %v89 = vld [vmem:[#allocation2 + $0x3c] sm:$0xf]
    %v90 = vld [vmem:[%s2] sm:$0x1]
    %v92 = vperm.slane %v90, 0
    %v110 = vunpack.c.l.b16 %v74
    %v111 = vunpack.c.l.b16 %v75
    %v112 = vunpack.c.l.b16 %v76
    %v113 = vunpack.c.l.b16 %v77
    %v114 = vunpack.c.l.b16 %v78
    %v115 = vunpack.c.l.b16 %v79
    %v116 = vunpack.c.l.b16 %v80
    %v117 = vunpack.c.l.b16 %v81
    %v118 = vunpack.c.l.b16 %v82
    %v119 = vunpack.c.l.b16 %v83
    %v120 = vunpack.c.l.b16 %v84
    %v121 = vunpack.c.l.b16 %v85
    %v122 = vunpack.c.l.b16 %v86
    %v123 = vunpack.c.l.b16 %v87
    %v124 = vunpack.c.l.b16 %v88
    %v125 = vunpack.c.l.b16 %v89
    %v126 = vpack.c.b16 %v111, %v110
    %v127 = vpack.c.b16 %v113, %v112
    %v128 = vpack.c.b16 %v115, %v114
    %v129 = vpack.c.b16 %v117, %v116
    %v130 = vpack.c.b16 %v119, %v118
    %v131 = vpack.c.b16 %v121, %v120
    %v132 = vpack.c.b16 %v123, %v122
    %v133 = vpack.c.b16 %v125, %v124
    %142 = vmatpush.bf16.msra.mxu0 %v133
    %143 = vmatpush.bf16.msra.mxu0 %v132
    %144 = vmatpush.bf16.msra.mxu0 %v131
    %145 = vmatpush.bf16.msra.mxu0 %v130
    %146 = vmatpush.bf16.msra.mxu0 %v129
    %147 = vmatpush.bf16.msra.mxu0 %v128
    %148 = vmatpush.bf16.msra.mxu0 %v127
    %149 = vmatpush.bf16.msra.mxu0 %v126
    %150 = vmatmul.bf16.gmra.mxu0 %v73
    %v151 = vpop.f32.mrf.mxu0
    %v152 = vadd.f32 %v92, %v151
    %v153 = vpop.f32.mrf.mxu0
    %154 = vdwg.mxu0
    %v155 = vmax.f32 %v152, 0.0
    %v156 = vpack.c.bf16 %v155, %v155
    %v157 = vld [vmem:[#allocation4] sm:$0xf]
    %v158 = vld [vmem:[#allocation4 + $0x4] sm:$0xf]
    %v159 = vld [vmem:[#allocation4 + $0x8] sm:$0xf]
    %v160 = vld [vmem:[#allocation4 + $0xc] sm:$0xf]
    %v161 = vld [vmem:[#allocation4 + $0x10] sm:$0xf]
    %v162 = vld [vmem:[#allocation4 + $0x14] sm:$0xf]
    %v163 = vld [vmem:[#allocation4 + $0x18] sm:$0xf]
    %v164 = vld [vmem:[#allocation4 + $0x1c] sm:$0xf]
    %v165 = vld [vmem:[#allocation4 + $0x20] sm:$0xf]
    %v166 = vld [vmem:[#allocation4 + $0x24] sm:$0xf]
    %v167 = vld [vmem:[#allocation4 + $0x28] sm:$0xf]
    %v168 = vld [vmem:[#allocation4 + $0x2c] sm:$0xf]
    %v169 = vld [vmem:[#allocation4 + $0x30] sm:$0xf]
    %v170 = vld [vmem:[#allocation4 + $0x34] sm:$0xf]
    %v171 = vld [vmem:[#allocation4 + $0x38] sm:$0xf]
    %v172 = vld [vmem:[#allocation4 + $0x3c] sm:$0xf]
    %v173 = vld [vmem:[%s4] sm:$0x1]
    %v175 = vperm.slane %v173, 0
    %v193 = vunpack.c.l.b16 %v157
    %v194 = vunpack.c.l.b16 %v158
    %v195 = vunpack.c.l.b16 %v159
    %v196 = vunpack.c.l.b16 %v160
    %v197 = vunpack.c.l.b16 %v161
    %v198 = vunpack.c.l.b16 %v162
    %v199 = vunpack.c.l.b16 %v163
    %v200 = vunpack.c.l.b16 %v164
    %v201 = vunpack.c.l.b16 %v165
    %v202 = vunpack.c.l.b16 %v166
    %v203 = vunpack.c.l.b16 %v167
    %v204 = vunpack.c.l.b16 %v168
    %v205 = vunpack.c.l.b16 %v169
    %v206 = vunpack.c.l.b16 %v170
    %v207 = vunpack.c.l.b16 %v171
    %v208 = vunpack.c.l.b16 %v172
    %v209 = vpack.c.b16 %v194, %v193
    %v210 = vpack.c.b16 %v196, %v195
    %v211 = vpack.c.b16 %v198, %v197
    %v212 = vpack.c.b16 %v200, %v199
    %v213 = vpack.c.b16 %v202, %v201
    %v214 = vpack.c.b16 %v204, %v203
    %v215 = vpack.c.b16 %v206, %v205
    %v216 = vpack.c.b16 %v208, %v207
    %225 = vmatpush.bf16.msra.mxu0 %v216
    %226 = vmatpush.bf16.msra.mxu0 %v215
    %227 = vmatpush.bf16.msra.mxu0 %v214
    %228 = vmatpush.bf16.msra.mxu0 %v213
    %229 = vmatpush.bf16.msra.mxu0 %v212
    %230 = vmatpush.bf16.msra.mxu0 %v211
    %231 = vmatpush.bf16.msra.mxu0 %v210
    %232 = vmatpush.bf16.msra.mxu0 %v209
    %233 = vmatmul.bf16.gmra.mxu0 %v156
    %v234 = vpop.f32.mrf.mxu0
    %v235 = vadd.f32 %v175, %v234
    %v236 = vpop.f32.mrf.mxu0
    %237 = vdwg.mxu0
    %v238 = vmax.f32 %v235, 0.0
    %v239 = vpack.c.bf16 %v238, %v238
    %v240 = vld [vmem:[#allocation6] sm:$0xf]
    %v241 = vld [vmem:[#allocation6 + $0x4] sm:$0xf]
    %v242 = vld [vmem:[#allocation6 + $0x8] sm:$0xf]
    %v243 = vld [vmem:[#allocation6 + $0xc] sm:$0xf]
    %v244 = vld [vmem:[#allocation6 + $0x10] sm:$0xf]
    %v245 = vld [vmem:[#allocation6 + $0x14] sm:$0xf]
    %v246 = vld [vmem:[#allocation6 + $0x18] sm:$0xf]
    %v247 = vld [vmem:[#allocation6 + $0x1c] sm:$0xf]
    %v248 = vld [vmem:[#allocation6 + $0x20] sm:$0xf]
    %v249 = vld [vmem:[#allocation6 + $0x24] sm:$0xf]
    %v250 = vld [vmem:[#allocation6 + $0x28] sm:$0xf]
    %v251 = vld [vmem:[#allocation6 + $0x2c] sm:$0xf]
    %v252 = vld [vmem:[#allocation6 + $0x30] sm:$0xf]
    %v253 = vld [vmem:[#allocation6 + $0x34] sm:$0xf]
    %v254 = vld [vmem:[#allocation6 + $0x38] sm:$0xf]
    %v255 = vld [vmem:[#allocation6 + $0x3c] sm:$0xf]
    %v256 = vld [vmem:[%s6] sm:$0x1]
    %v258 = vperm.slane %v256, 0
    %v276 = vunpack.c.l.b16 %v240
    %v277 = vunpack.c.l.b16 %v241
    %v278 = vunpack.c.l.b16 %v242
    %v279 = vunpack.c.l.b16 %v243
    %v280 = vunpack.c.l.b16 %v244
    %v281 = vunpack.c.l.b16 %v245
    %v282 = vunpack.c.l.b16 %v246
    %v283 = vunpack.c.l.b16 %v247
    %v284 = vunpack.c.l.b16 %v248
    %v285 = vunpack.c.l.b16 %v249
    %v286 = vunpack.c.l.b16 %v250
    %v287 = vunpack.c.l.b16 %v251
    %v288 = vunpack.c.l.b16 %v252
    %v289 = vunpack.c.l.b16 %v253
    %v290 = vunpack.c.l.b16 %v254
    %v291 = vunpack.c.l.b16 %v255
    %v292 = vpack.c.b16 %v277, %v276
    %v293 = vpack.c.b16 %v279, %v278
    %v294 = vpack.c.b16 %v281, %v280
    %v295 = vpack.c.b16 %v283, %v282
    %v296 = vpack.c.b16 %v285, %v284
    %v297 = vpack.c.b16 %v287, %v286
    %v298 = vpack.c.b16 %v289, %v288
    %v299 = vpack.c.b16 %v291, %v290
    %308 = vmatpush.bf16.msra.mxu0 %v299
    %309 = vmatpush.bf16.msra.mxu0 %v298
    %310 = vmatpush.bf16.msra.mxu0 %v297
    %311 = vmatpush.bf16.msra.mxu0 %v296
    %312 = vmatpush.bf16.msra.mxu0 %v295
    %313 = vmatpush.bf16.msra.mxu0 %v294
    %314 = vmatpush.bf16.msra.mxu0 %v293
    %315 = vmatpush.bf16.msra.mxu0 %v292
    %316 = vmatmul.bf16.gmra.mxu0 %v239
    %v317 = vpop.f32.mrf.mxu0
    %v318 = vadd.f32 %v258, %v317
    %v319 = vpop.f32.mrf.mxu0
    %320 = vdwg.mxu0
    %321 = vst [vmem:[%s7] sm:$0xff] %v318
    // Predicated region
    $region42: #{_forward_impl.1} parent=1 // pred_check
      _
    $region43: #{_forward_impl.1} parent=1 // pred_check_branch
      %323 = sbr.rel (0) target = $region45
    $region44: #{_forward_impl.1} parent=1 // pred_region
      _
    $region45: #{_forward_impl.1} parent=1 // pred_fallthru
      _
    // Predicated region
    $region46: #{_forward_impl.1} parent=1 // pred_check
      _
    $region47: #{_forward_impl.1} parent=1 // pred_check_branch
      %325 = sbr.rel (0) target = $region49
    $region48: #{_forward_impl.1} parent=1 // pred_region
      _
    $region49: #{_forward_impl.1} parent=1 // pred_fallthru
      _
    %326 = vsyncpa [#allocation3], 1
    %327 = vsyncpa [#allocation5], 1

</llo_original>
